<compile_context>
chip_gen: v7x
topology: tpu7x:2x2x1
jax: 0.10.0
libtpu: 0.0.40
codegen_flags: <defaults>
</compile_context>

<pallas_src>
import math

import jax
import jax.numpy as jnp
from jax.experimental import pallas as pl
from jax.experimental.pallas import tpu as pltpu


# ----------------------------------------------------------------------------
# Linear projection kernels (row-tiled, trans_b dot_general, bf16 operands)
# ----------------------------------------------------------------------------

def _linear_kernel(x_ref, w_ref, b_ref, o_ref):
    # y = x @ W^T + b  (PyTorch nn.Linear: W is (out, in)); no in-kernel transpose,
    # the contraction is expressed directly via dimension_numbers.
    x = x_ref[...].astype(jnp.bfloat16)
    y = jax.lax.dot_general(
        x, w_ref[...],
        dimension_numbers=(((1,), (1,)), ((), ())),
        preferred_element_type=jnp.float32)
    o_ref[...] = (y + b_ref[...]).astype(o_ref.dtype)


def _dual_linear_kernel(x_ref, w1_ref, b1_ref, w2_ref, b2_ref, o1_ref, o2_ref):
    # Fused pair of projections sharing the same input tile: the activation is
    # read from HBM once and pushed through the MXU twice.
    x = x_ref[...].astype(jnp.bfloat16)
    y1 = jax.lax.dot_general(
        x, w1_ref[...],
        dimension_numbers=(((1,), (1,)), ((), ())),
        preferred_element_type=jnp.float32)
    o1_ref[...] = (y1 + b1_ref[...]).astype(o1_ref.dtype)
    y2 = jax.lax.dot_general(
        x, w2_ref[...],
        dimension_numbers=(((1,), (1,)), ((), ())),
        preferred_element_type=jnp.float32)
    o2_ref[...] = (y2 + b2_ref[...]).astype(o2_ref.dtype)


def pallas_linear(x, w, b, out_dtype=jnp.float32, block_rows=256):
    """x: (N, Din), w: (Dout, Din) bf16, b: (Dout,) f32 -> (N, Dout) out_dtype."""
    n, din = x.shape
    dout = w.shape[0]
    tm = n if n <= block_rows else block_rows
    # NOTE: Din / Dout are small for this module, so no K/N tiling is needed;
    # the weight block stays resident across the row grid.
    return pl.pallas_call(
        _linear_kernel,
        out_shape=jax.ShapeDtypeStruct((n, dout), out_dtype),
        grid=(pl.cdiv(n, tm),),
        in_specs=[
            pl.BlockSpec((tm, din), lambda i: (i, 0)),
            pl.BlockSpec((dout, din), lambda i: (0, 0)),
            pl.BlockSpec((1, dout), lambda i: (0, 0)),
        ],
        out_specs=pl.BlockSpec((tm, dout), lambda i: (i, 0)),
        compiler_params=pltpu.CompilerParams(
            dimension_semantics=("parallel",)),
    )(x, w, b.reshape(1, dout))


def pallas_dual_linear(x, w1, b1, w2, b2, out_dtype=jnp.bfloat16, block_rows=256):
    """Two fused projections of the same input (reads x from HBM once)."""
    n, din = x.shape
    dout = w1.shape[0]
    tm = n if n <= block_rows else block_rows
    return pl.pallas_call(
        _dual_linear_kernel,
        out_shape=(jax.ShapeDtypeStruct((n, dout), out_dtype),
                   jax.ShapeDtypeStruct((n, dout), out_dtype)),
        grid=(pl.cdiv(n, tm),),
        in_specs=[
            pl.BlockSpec((tm, din), lambda i: (i, 0)),
            pl.BlockSpec((dout, din), lambda i: (0, 0)),
            pl.BlockSpec((1, dout), lambda i: (0, 0)),
            pl.BlockSpec((dout, din), lambda i: (0, 0)),
            pl.BlockSpec((1, dout), lambda i: (0, 0)),
        ],
        out_specs=(pl.BlockSpec((tm, dout), lambda i: (i, 0)),
                   pl.BlockSpec((tm, dout), lambda i: (i, 0))),
        compiler_params=pltpu.CompilerParams(
            dimension_semantics=("parallel",)),
    )(x, w1, b1.reshape(1, dout), w2, b2.reshape(1, dout))


# ----------------------------------------------------------------------------
# Bidirectional attention kernel
# ----------------------------------------------------------------------------

def make_biattn_kernel(heads_per_block, head_dim):
    hpb, hd = heads_per_block, head_dim

    def biattn_kernel(q_ref, k_ref, vv_ref, vl_ref, m_ref, ov_ref, ol_ref):
        # Refs per (batch, head-group):
        #   q_ref/vv_ref: (T, hpb*hd) bf16, k_ref/vl_ref: (S, hpb*hd) bf16,
        #   m_ref: (1, S) f32, ov_ref: (T, hpb*hd), ol_ref: (S, hpb*hd).
        m = m_ref[...]
        # PyTorch masked_fill semantics: entries ==0 -> -9e15, nonzero entries keep
        # their original value, then the mask is ADDED to the logits.
        mask_add = jnp.where(m == 0.0, jnp.float32(-9e15), m)          # (1, S)

        for i in range(hpb):                                           # static unroll
            lo = i * hd
            q = q_ref[:, lo:lo + hd].astype(jnp.bfloat16)              # (T, hd)
            k = k_ref[:, lo:lo + hd].astype(jnp.bfloat16)              # (S, hd)
            vv = vv_ref[:, lo:lo + hd].astype(jnp.bfloat16)            # (T, hd)
            vl = vl_ref[:, lo:lo + hd].astype(jnp.bfloat16)            # (S, hd)

            # attn_weights = (q * scale) @ k^T  (scale already folded into q proj)
            aw = jax.lax.dot_general(
                q, k, dimension_numbers=(((1,), (1,)), ((), ())),
                preferred_element_type=jnp.float32)                    # (T, S) f32
            # clamp_min_for_underflow / clamp_max_for_overflow
            aw = jnp.clip(aw, -50000.0, 50000.0)

            # --- language-side softmax (over T) without materializing aw.T ---
            col_max = jnp.max(aw, axis=0, keepdims=True)               # (1, S)
            aw_l = jnp.maximum(aw - col_max, -50000.0)                 # max-clamp is a no-op
            e_l = jnp.exp(aw_l)                                        # row max is exactly 0
            inv_l = pl.reciprocal(jnp.sum(e_l, axis=0, keepdims=True), approx=True)
            p_l = e_l * inv_l                                          # (T, S), cols sum to 1

            # --- vision-side softmax (over S) with additive language mask ---
            aw_v = aw + mask_add
            row_max = jnp.max(aw_v, axis=1, keepdims=True)             # (T, 1)
            e_v = jnp.exp(aw_v - row_max)
            inv_v = pl.reciprocal(jnp.sum(e_v, axis=1, keepdims=True), approx=True)
            p_v = e_v * inv_v                                          # (T, S)

            # attn_output_v = probs_v @ value_l
            ov = jax.lax.dot_general(
                p_v.astype(jnp.bfloat16), vl,
                dimension_numbers=(((1,), (0,)), ((), ())),
                preferred_element_type=jnp.float32)                    # (T, hd)
            # attn_output_l = probs_l^T @ value_v   (contract over T, no transpose)
            ol = jax.lax.dot_general(
                p_l.astype(jnp.bfloat16), vv,
                dimension_numbers=(((0,), (0,)), ((), ())),
                preferred_element_type=jnp.float32)                    # (S, hd)

            ov_ref[:, lo:lo + hd] = ov.astype(ov_ref.dtype)
            ol_ref[:, lo:lo + hd] = ol.astype(ol_ref.dtype)

    return biattn_kernel


def _choose_heads_per_block(num_heads, head_dim, embed_dim, max_block_width=512):
    """Pack heads so the block lane-width is dense (multiple of 128 or full E)."""
    if embed_dim <= max_block_width:
        return num_heads                      # whole E per step (also collapses the head grid)
    cands = [h for h in range(1, num_heads + 1)
             if num_heads % h == 0
             and (h * head_dim) % 128 == 0
             and h * head_dim <= max_block_width]
    return max(cands) if cands else num_heads


def pallas_bi_attention(q, k, vv, vl, mask, num_heads, head_dim, heads_per_block=None):
    """q,vv: (B,T,E); k,vl: (B,S,E); mask: (B,1,S) f32 -> ((B,T,E),(B,S,E)).

    The head split/merge is done entirely by the BlockSpecs (no relayout in XLA).
    """
    B, T, E = q.shape
    S = k.shape[1]
    assert E == num_heads * head_dim
    if heads_per_block is None:
        heads_per_block = _choose_heads_per_block(num_heads, head_dim, E)
    hpb = heads_per_block
    assert num_heads % hpb == 0
    W = hpb * head_dim
    G = num_heads // hpb

    # TODO(synk): for very large tgt_len (real GLIP feature maps) add a T grid axis
    # with flash-style running max/denominator accumulators for the language-side
    # softmax so the working set fits v7x's 64 MiB VMEM.
    kern = make_biattn_kernel(hpb, head_dim)
    return pl.pallas_call(
        kern,
        out_shape=(jax.ShapeDtypeStruct((B, T, E), q.dtype),
                   jax.ShapeDtypeStruct((B, S, E), q.dtype)),
        grid=(B, G),
        in_specs=[
            pl.BlockSpec((None, T, W), lambda b, g: (b, 0, g)),   # q
            pl.BlockSpec((None, S, W), lambda b, g: (b, 0, g)),   # k
            pl.BlockSpec((None, T, W), lambda b, g: (b, 0, g)),   # value_v
            pl.BlockSpec((None, S, W), lambda b, g: (b, 0, g)),   # value_l
            pl.BlockSpec((None, 1, S), lambda b, g: (b, 0, 0)),   # attention_mask_l
        ],
        out_specs=(
            pl.BlockSpec((None, T, W), lambda b, g: (b, 0, g)),
            pl.BlockSpec((None, S, W), lambda b, g: (b, 0, g)),
        ),
        compiler_params=pltpu.CompilerParams(
            dimension_semantics=("parallel", "parallel"),
            vmem_limit_bytes=48 * 1024 * 1024),
    )(q, k, vv, vl, mask)


# ----------------------------------------------------------------------------
# Parameters
# ----------------------------------------------------------------------------

def xavier_uniform(key, out_dim, in_dim):
    bound = math.sqrt(6.0 / (in_dim + out_dim))
    return jax.random.uniform(key, (out_dim, in_dim), jnp.float32, -bound, bound)


def init_params(key, v_dim, l_dim, embed_dim):
    ks = jax.random.split(key, 6)
    return {
        "v_proj_w": xavier_uniform(ks[0], embed_dim, v_dim),
        "v_proj_b": jnp.zeros((embed_dim,), jnp.float32),
        "l_proj_w": xavier_uniform(ks[1], embed_dim, l_dim),
        "l_proj_b": jnp.zeros((embed_dim,), jnp.float32),
        "values_v_proj_w": xavier_uniform(ks[2], embed_dim, v_dim),
        "values_v_proj_b": jnp.zeros((embed_dim,), jnp.float32),
        "values_l_proj_w": xavier_uniform(ks[3], embed_dim, l_dim),
        "values_l_proj_b": jnp.zeros((embed_dim,), jnp.float32),
        "out_v_proj_w": xavier_uniform(ks[4], v_dim, embed_dim),
        "out_v_proj_b": jnp.zeros((v_dim,), jnp.float32),
        "out_l_proj_w": xavier_uniform(ks[5], l_dim, embed_dim),
        "out_l_proj_b": jnp.zeros((l_dim,), jnp.float32),
    }


def prepare_params(raw, num_heads):
    """Inference-time params: scale folded into the query projection, bf16 weights."""
    E = raw["v_proj_w"].shape[0]
    head_dim = E // num_heads
    scale = head_dim ** (-0.5)
    bf = lambda w: w.astype(jnp.bfloat16)
    return {
        "wq": bf(raw["v_proj_w"] * scale),              # query_states *= scale, folded
        "bq": raw["v_proj_b"] * scale,
        "wvv": bf(raw["values_v_proj_w"]),
        "bvv": raw["values_v_proj_b"],
        "wk": bf(raw["l_proj_w"]),
        "bk": raw["l_proj_b"],
        "wvl": bf(raw["values_l_proj_w"]),
        "bvl": raw["values_l_proj_b"],
        "w_out_v": bf(raw["out_v_proj_w"]),
        "b_out_v": raw["out_v_proj_b"],
        "w_out_l": bf(raw["out_l_proj_w"]),
        "b_out_l": raw["out_l_proj_b"],
    }


# ----------------------------------------------------------------------------
# Forward pass (Pallas)
# ----------------------------------------------------------------------------

def bi_multi_head_attention(params, v, l, attention_mask_l, num_heads):
    B, T, v_dim = v.shape
    S, l_dim = l.shape[1], l.shape[2]
    E = params["wq"].shape[0]
    head_dim = E // num_heads

    # Fused projections: each of v / l streams through the MXU once for two outputs.
    q, vv = pallas_dual_linear(v.reshape(B * T, v_dim),
                               params["wq"], params["bq"],
                               params["wvv"], params["bvv"],
                               out_dtype=jnp.bfloat16)
    k, vl = pallas_dual_linear(l.reshape(B * S, l_dim),
                               params["wk"], params["bk"],
                               params["wvl"], params["bvl"],
                               out_dtype=jnp.bfloat16)

    # Stay in (B, seq, E) layout; BlockSpecs in the attention call do the head split.
    q = q.reshape(B, T, E)
    vv = vv.reshape(B, T, E)
    k = k.reshape(B, S, E)
    vl = vl.reshape(B, S, E)
    mask = attention_mask_l.astype(jnp.float32).reshape(B, 1, S)

    attn_v, attn_l = pallas_bi_attention(q, k, vv, vl, mask, num_heads, head_dim)

    out_v = pallas_linear(attn_v.reshape(B * T, E), params["w_out_v"],
                          params["b_out_v"], out_dtype=jnp.float32).reshape(B, T, v_dim)
    out_l = pallas_linear(attn_l.reshape(B * S, E), params["w_out_l"],
                          params["b_out_l"], out_dtype=jnp.float32).reshape(B, S, l_dim)
    return out_v, out_l


# ----------------------------------------------------------------------------
# Pure-JAX f32 reference (faithful to the PyTorch module)
# ----------------------------------------------------------------------------

def reference(params, v, l, attention_mask_l, num_heads):
    B, T, v_dim = v.shape
    S, l_dim = l.shape[1], l.shape[2]
    E = params["v_proj_w"].shape[0]
    hd = E // num_heads
    scale = hd ** (-0.5)

    lin = lambda x, w, b: x @ w.T + b
    q = lin(v, params["v_proj_w"], params["v_proj_b"]) * scale
    k = lin(l, params["l_proj_w"], params["l_proj_b"])
    vv = lin(v, params["values_v_proj_w"], params["values_v_proj_b"])
    vl = lin(l, params["values_l_proj_w"], params["values_l_proj_b"])

    sh = lambda x, seq: x.reshape(B, seq, num_heads, hd).transpose(0, 2, 1, 3)
    q, k, vv, vl = sh(q, T), sh(k, S), sh(vv, T), sh(vl, S)

    aw = jnp.einsum("bhtd,bhsd->bhts", q, k)
    aw = jnp.clip(aw, -50000.0, 50000.0)

    aw_t = jnp.swapaxes(aw, -1, -2)
    aw_l = aw_t - jnp.max(aw_t, axis=-1, keepdims=True)
    aw_l = jnp.clip(aw_l, -50000.0, 50000.0)
    p_l = jax.nn.softmax(aw_l, axis=-1)

    m = attention_mask_l.astype(jnp.float32)[:, None, None, :]  # (B,1,1,S)
    m = jnp.where(m == 0.0, -9e15, m)
    p_v = jax.nn.softmax(aw + m, axis=-1)

    out_v = jnp.einsum("bhts,bhsd->bhtd", p_v, vl).transpose(0, 2, 1, 3).reshape(B, T, E)
    out_l = jnp.einsum("bhst,bhtd->bhsd", p_l, vv).transpose(0, 2, 1, 3).reshape(B, S, E)

    out_v = lin(out_v, params["out_v_proj_w"], params["out_v_proj_b"])
    out_l = lin(out_l, params["out_l_proj_w"], params["out_l_proj_b"])
    return out_v, out_l


# ----------------------------------------------------------------------------

if __name__ == "__main__":
    B = 2
    T = 16          # vision tokens (tgt_len)
    S = 8           # language tokens (src_len)
    V_DIM = 32
    L_DIM = 32
    EMBED = 32
    HEADS = 4

    key = jax.random.PRNGKey(0)
    kp, kv, kl = jax.random.split(key, 3)

    raw_params = init_params(kp, V_DIM, L_DIM, EMBED)
    params = prepare_params(raw_params, HEADS)

    v = jax.random.normal(kv, (B, T, V_DIM), jnp.float32)
    l = jax.random.normal(kl, (B, S, L_DIM), jnp.float32)
    # attention_mask_l: 1 = attend, 0 = masked (last two language tokens of batch 1 masked)
    attention_mask_l = jnp.ones((B, S), jnp.float32).at[1, -2:].set(0.0)

    out_v, out_l = bi_multi_head_attention(params, v, l, attention_mask_l, HEADS)
    out_v = jax.block_until_ready(out_v)
    out_l = jax.block_until_ready(out_l)

    ref_v, ref_l = reference(raw_params, v, l, attention_mask_l, HEADS)
    # bf16 MXU operands + approx reciprocal -> loosened tolerance vs. the f32 reference.
    assert jnp.allclose(out_v, ref_v, atol=3e-2, rtol=3e-2), "out_v mismatch"
    assert jnp.allclose(out_l, ref_l, atol=3e-2, rtol=3e-2), "out_l mismatch"

    print("KERNEL_OK")
</pallas_src>

<mosaic_0001>
module attributes {stable_mosaic.version = 11 : i64} {
  func.func @_dual_linear_kernel(%arg0: i32, %arg1: memref<32x32xf32, #tpu.memory_space<vmem>>, %arg2: memref<32x32xbf16, #tpu.memory_space<vmem>>, %arg3: memref<1x32xf32, #tpu.memory_space<vmem>>, %arg4: memref<32x32xbf16, #tpu.memory_space<vmem>>, %arg5: memref<1x32xf32, #tpu.memory_space<vmem>>, %arg6: memref<32x32xbf16, #tpu.memory_space<vmem>>, %arg7: memref<32x32xbf16, #tpu.memory_space<vmem>>) attributes {dimension_semantics = [#tpu.dimension_semantics<parallel>], iteration_bounds = array<i64: 1>, scalar_prefetch = 0 : i64, scratch_operands = 0 : i64, tpu.core_type = #tpu.core_type<tc>, window_params = [{transform_indices = @transform_0, window_bounds = array<i64: 32, 32>}, {pipeline_mode = #tpu.pipeline_mode<synchronous>, transform_indices = @transform_1, window_bounds = array<i64: 32, 32>}, {pipeline_mode = #tpu.pipeline_mode<synchronous>, transform_indices = @transform_2, window_bounds = array<i64: 1, 32>}, {pipeline_mode = #tpu.pipeline_mode<synchronous>, transform_indices = @transform_3, window_bounds = array<i64: 32, 32>}, {pipeline_mode = #tpu.pipeline_mode<synchronous>, transform_indices = @transform_4, window_bounds = array<i64: 1, 32>}, {transform_indices = @transform_5, window_bounds = array<i64: 32, 32>}, {transform_indices = @transform_6, window_bounds = array<i64: 32, 32>}]} {
    %c0 = arith.constant 0 : index
    %c0_0 = arith.constant 0 : index
    %0 = vector.load %arg1[%c0, %c0_0] : memref<32x32xf32, #tpu.memory_space<vmem>>, vector<32x32xf32>
    %1 = arith.truncf %0 : vector<32x32xf32> to vector<32x32xbf16>
    %c0_1 = arith.constant 0 : index
    %c0_2 = arith.constant 0 : index
    %2 = vector.load %arg2[%c0_1, %c0_2] : memref<32x32xbf16, #tpu.memory_space<vmem>>, vector<32x32xbf16>
    %cst = arith.constant dense<0.000000e+00> : vector<32x32xf32>
    %3 = tpu.matmul %1, %2, %cst {dimension_numbers = #tpu.dot_dimension_numbers<[1], [1], [0], [0], [0, 0, 1, 0], [], []>} : vector<32x32xbf16>, vector<32x32xbf16>, vector<32x32xf32> -> vector<32x32xf32>
    %c0_3 = arith.constant 0 : index
    %c0_4 = arith.constant 0 : index
    %4 = vector.load %arg3[%c0_3, %c0_4] : memref<1x32xf32, #tpu.memory_space<vmem>>, vector<1x32xf32>
    %5 = vector.broadcast %4 : vector<1x32xf32> to vector<32x32xf32>
    %6 = arith.addf %3, %5 : vector<32x32xf32>
    %7 = arith.truncf %6 : vector<32x32xf32> to vector<32x32xbf16>
    %c0_5 = arith.constant 0 : index
    %c0_6 = arith.constant 0 : index
    %8 = vector.load %arg6[%c0_5, %c0_6] : memref<32x32xbf16, #tpu.memory_space<vmem>>, vector<32x32xbf16>
    tpu.vector_store %arg6[%c0_5, %c0_6], %7 {strides = array<i32>} : memref<32x32xbf16, #tpu.memory_space<vmem>>, vector<32x32xbf16>,
    %c0_7 = arith.constant 0 : index
    %c0_8 = arith.constant 0 : index
    %9 = vector.load %arg4[%c0_7, %c0_8] : memref<32x32xbf16, #tpu.memory_space<vmem>>, vector<32x32xbf16>
    %cst_9 = arith.constant dense<0.000000e+00> : vector<32x32xf32>
    %10 = tpu.matmul %1, %9, %cst_9 {dimension_numbers = #tpu.dot_dimension_numbers<[1], [1], [0], [0], [0, 0, 1, 0], [], []>} : vector<32x32xbf16>, vector<32x32xbf16>, vector<32x32xf32> -> vector<32x32xf32>
    %c0_10 = arith.constant 0 : index
    %c0_11 = arith.constant 0 : index
    %11 = vector.load %arg5[%c0_10, %c0_11] : memref<1x32xf32, #tpu.memory_space<vmem>>, vector<1x32xf32>
    %12 = vector.broadcast %11 : vector<1x32xf32> to vector<32x32xf32>
    %13 = arith.addf %10, %12 : vector<32x32xf32>
    %14 = arith.truncf %13 : vector<32x32xf32> to vector<32x32xbf16>
    %c0_12 = arith.constant 0 : index
    %c0_13 = arith.constant 0 : index
    %15 = vector.load %arg7[%c0_12, %c0_13] : memref<32x32xbf16, #tpu.memory_space<vmem>>, vector<32x32xbf16>
    tpu.vector_store %arg7[%c0_12, %c0_13], %14 {strides = array<i32>} : memref<32x32xbf16, #tpu.memory_space<vmem>>, vector<32x32xbf16>,
    return
  }
  func.func @transform_0(%arg0: i32) -> (i32, i32) {
    %c0_i32 = arith.constant 0 : i32
    %c0_i32_0 = arith.constant 0 : i32
    return %arg0, %c0_i32 : i32, i32
  }
  func.func @transform_1(%arg0: i32) -> (i32, i32) {
    %c0_i32 = arith.constant 0 : i32
    %c0_i32_0 = arith.constant 0 : i32
    %c0_i32_1 = arith.constant 0 : i32
    return %c0_i32, %c0_i32_0 : i32, i32
  }
  func.func @transform_2(%arg0: i32) -> (i32, i32) {
    %c0_i32 = arith.constant 0 : i32
    %c0_i32_0 = arith.constant 0 : i32
    %c0_i32_1 = arith.constant 0 : i32
    return %c0_i32, %c0_i32_0 : i32, i32
  }
  func.func @transform_3(%arg0: i32) -> (i32, i32) {
    %c0_i32 = arith.constant 0 : i32
    %c0_i32_0 = arith.constant 0 : i32
    %c0_i32_1 = arith.constant 0 : i32
    return %c0_i32, %c0_i32_0 : i32, i32
  }
  func.func @transform_4(%arg0: i32) -> (i32, i32) {
    %c0_i32 = arith.constant 0 : i32
    %c0_i32_0 = arith.constant 0 : i32
    %c0_i32_1 = arith.constant 0 : i32
    return %c0_i32, %c0_i32_0 : i32, i32
  }
  func.func @transform_5(%arg0: i32) -> (i32, i32) {
    %c0_i32 = arith.constant 0 : i32
    %c0_i32_0 = arith.constant 0 : i32
    return %arg0, %c0_i32 : i32, i32
  }
  func.func @transform_6(%arg0: i32) -> (i32, i32) {
    %c0_i32 = arith.constant 0 : i32
    %c0_i32_0 = arith.constant 0 : i32
    return %arg0, %c0_i32 : i32, i32
  }
}

</mosaic_0001>

<llo_original>
// kernel: tpu_custom_call.1
$region0: #{tpu_custom_call.1}
  #allocation0 [shape = 'u32[]', space=smem, size = 0x4, offset = 0x4, fixed_abs, tag = 'smem constant byte address 0x4 - core index']
  #allocation1 [shape = 'u32[144,128]{1,0:T(1,128)}', space=vmem, size = 0x12000, scoped, tag = 'internal scratch']
  %s0 = inlined_call_operand.hbm [shape: f32[32,32], index: 0, kind: input, shape index: {}]
  %s1 = inlined_call_operand.hbm [shape: bf16[32,32], index: 1, kind: input, shape index: {}]
  %s2 = inlined_call_operand.vmem [shape: f32[1,32], index: 2, kind: input, shape index: {}]
  %s3 = inlined_call_operand.hbm [shape: bf16[32,32], index: 3, kind: input, shape index: {}]
  %s4 = inlined_call_operand.vmem [shape: f32[1,32], index: 4, kind: input, shape index: {}]
  %s5 = inlined_call_operand.hbm [shape: bf16[32,32], index: 5, kind: output, shape index: {0}]
  %s6 = inlined_call_operand.hbm [shape: bf16[32,32], index: 6, kind: output, shape index: {1}]
  %7 = xla_tuple %s5, %s6
  %s8 = sld [smem:[#allocation0]]
  $region50: #{tpu_custom_call.1} parent=0
    _
  %s10 = ssub.s32 1, %s8
  %s11 = scalar_select 0, %s10, %s8
  $region1: #{tpu_custom_call.1} parent=0
    #allocation2 [shape = 'u8[16384]{0}', space=vmem, size = 0x4000, scoped, tag = 'input window, operand 0, single buffered']
    #allocation3 [shape = 's32[1]{0}', space=sflag, size = 0x4, scoped, tag = 'scoped memory for tpu_custom_call.1']
    #allocation4 [shape = 's32[1]{0}', space=sflag, size = 0x4, scoped, tag = 'scoped memory for tpu_custom_call.1']
    #allocation5 [shape = 'u8[8192]{0}', space=vmem, size = 0x2000, scoped, tag = 'input window, operand 1, single buffered']
    #allocation6 [shape = 's32[1]{0}', space=sflag, size = 0x4, scoped, tag = 'scoped memory for tpu_custom_call.1']
    #allocation7 [shape = 'u8[8192]{0}', space=vmem, size = 0x2000, scoped, tag = 'input window, operand 3, single buffered']
    #allocation8 [shape = 'u8[8192]{0}', space=vmem, size = 0x2000, scoped, tag = 'output window, operand 0, single buffered']
    #allocation9 [shape = 'u8[8192]{0}', space=vmem, size = 0x2000, scoped, tag = 'output window, operand 1, single buffered']
    #allocation10 [shape = 's32[1]{0}', space=sflag, size = 0x4, scoped, tag = 'scoped memory for tpu_custom_call.1']
    %12 = vsyncpa [#allocation3], 0
    %13 = vsyncpa [#allocation6], 0
    %14 = vsyncpa [#allocation4], 0
    %15 = vsyncpa [#allocation10], 0
    // Predicated region
    $region2: #{tpu_custom_call.1} parent=1 // pred_check
      _
    $region3: #{tpu_custom_call.1} parent=1 // pred_check_branch
      %17 = sbr.rel (0) target = $region5
    $region4: #{tpu_custom_call.1} parent=1 // pred_region
      %s19 = ssub.s32 512, 512
      %20 = vsyncadd [#allocation3], %s19
      %s21 = sshll.u32 [#allocation2], 4
      %s22 = int_to_ptr.vmem [resolvable:$true] %s21
      %27 = dma.hbm_to_vmem [thread:$0]  %s0, 512, %s22, [#allocation3], 128, 128, 8
    $region5: #{tpu_custom_call.1} parent=1 // pred_fallthru
      _
    // Predicated region
    $region6: #{tpu_custom_call.1} parent=1 // pred_check
      _
    $region7: #{tpu_custom_call.1} parent=1 // pred_check_branch
      %29 = sbr.rel (0) target = $region9
    $region8: #{tpu_custom_call.1} parent=1 // pred_region
      %s31 = ssub.s32 256, 256
      %32 = vsyncadd [#allocation6], %s31
      %s33 = sshll.u32 [#allocation5], 4
      %s34 = int_to_ptr.vmem [resolvable:$true] %s33
      %39 = dma.hbm_to_vmem [thread:$0]  %s1, 256, %s34, [#allocation6], 64, 64, 4
    $region9: #{tpu_custom_call.1} parent=1 // pred_fallthru
      _
    // Predicated region
    $region10: #{tpu_custom_call.1} parent=1 // pred_check
      _
    $region11: #{tpu_custom_call.1} parent=1 // pred_check_branch
      %41 = sbr.rel (0) target = $region13
    $region12: #{tpu_custom_call.1} parent=1 // pred_region
      _
    $region13: #{tpu_custom_call.1} parent=1 // pred_fallthru
      _
    // Predicated region
    $region14: #{tpu_custom_call.1} parent=1 // pred_check
      _
    $region15: #{tpu_custom_call.1} parent=1 // pred_check_branch
      %43 = sbr.rel (0) target = $region17
    $region16: #{tpu_custom_call.1} parent=1 // pred_region
      %s45 = ssub.s32 256, 256
      %46 = vsyncadd [#allocation6], %s45
      %s47 = sshll.u32 [#allocation7], 4
      %s48 = int_to_ptr.vmem [resolvable:$true] %s47
      %53 = dma.hbm_to_vmem [thread:$0]  %s3, 256, %s48, [#allocation6], 64, 64, 4
    $region17: #{tpu_custom_call.1} parent=1 // pred_fallthru
      _
    // Predicated region
    $region18: #{tpu_custom_call.1} parent=1 // pred_check
      _
    $region19: #{tpu_custom_call.1} parent=1 // pred_check_branch
      %55 = sbr.rel (0) target = $region21
    $region20: #{tpu_custom_call.1} parent=1 // pred_region
      _
    $region21: #{tpu_custom_call.1} parent=1 // pred_fallthru
      _
    // Predicated region
    $region22: #{tpu_custom_call.1} parent=1 // pred_check
      _
    $region23: #{tpu_custom_call.1} parent=1 // pred_check_branch
      %57 = sbr.rel (0) target = $region25
    $region24: #{tpu_custom_call.1} parent=1 // pred_region
      %58 = dma.done [#allocation3], 512
    $region25: #{tpu_custom_call.1} parent=1 // pred_fallthru
      _
    // Predicated region
    $region26: #{tpu_custom_call.1} parent=1 // pred_check
      _
    $region27: #{tpu_custom_call.1} parent=1 // pred_check_branch
      %60 = sbr.rel (0) target = $region29
    $region28: #{tpu_custom_call.1} parent=1 // pred_region
      %61 = dma.done [#allocation6], 256
    $region29: #{tpu_custom_call.1} parent=1 // pred_fallthru
      _
    // Predicated region
    $region30: #{tpu_custom_call.1} parent=1 // pred_check
      _
    $region31: #{tpu_custom_call.1} parent=1 // pred_check_branch
      %63 = sbr.rel (0) target = $region33
    $region32: #{tpu_custom_call.1} parent=1 // pred_region
      %64 = dma.done [#allocation6], 256
    $region33: #{tpu_custom_call.1} parent=1 // pred_fallthru
      _
    %v66 = vld [vmem:[#allocation2] sm:$0xff]
    %v67 = vld [vmem:[#allocation2 + $0x8] sm:$0xff]
    %v68 = vld [vmem:[#allocation2 + $0x10] sm:$0xff]
    %v69 = vld [vmem:[#allocation2 + $0x18] sm:$0xff]
    %v70 = vpack.c.bf16 %v67, %v66
    %v71 = vpack.c.bf16 %v69, %v68
    %v72 = vld [vmem:[#allocation5] sm:$0xf]
    %v73 = vld [vmem:[#allocation5 + $0x4] sm:$0xf]
    %v74 = vld [vmem:[#allocation5 + $0x8] sm:$0xf]
    %v75 = vld [vmem:[#allocation5 + $0xc] sm:$0xf]
    %v76 = vld [vmem:[%s2] sm:$0x1]
    %v78 = vlaneseq
    %v79 = vshrl.u32 %v78, 7
    %v80 = vsub.s32 0, %v79
    %v81 = vrot.slane %v76, %v80
    %v87 = vunpack.c.l.b16 %v72
    %v88 = vunpack.c.l.b16 %v73
    %v89 = vunpack.c.l.b16 %v74
    %v90 = vunpack.c.l.b16 %v75
    %v91 = vpack.c.b16 %v88, %v87
    %v92 = vpack.c.b16 %v90, %v89
    %vm93 = vcmask 261120
    %v95 = vsel %vm93, %v70, 0
    %v98 = vsel %vm93, %v71, 0
    %v101 = vsel %vm93, %v91, 0
    %v104 = vsel %vm93, %v92, 0
    %106 = vmatprep.subr.bf16.mxu0 0
    %107 = vmatpush1.bf16.xpose.msra.mxu0 %v101
    %108 = vmatprep.subr.bf16.mxu0 0
    %109 = vmatpush1.bf16.xpose.msra.mxu0 %v104
    %110 = vmatprep.subr.bf16.mxu0 0
    %111 = vmatpush1.bf16.xpose.msra.mxu0 0
    %112 = vmatprep.subr.bf16.mxu0 0
    %113 = vmatpush1.bf16.xpose.msra.mxu0 0
    %114 = vmatprep.subr.bf16.mxu0 0
    %115 = vmatpush1.bf16.xpose.msra.mxu0 0
    %116 = vmatprep.subr.bf16.mxu0 0
    %117 = vmatpush1.bf16.xpose.msra.mxu0 0
    %118 = vmatprep.subr.bf16.mxu0 0
    %119 = vmatpush1.bf16.xpose.msra.mxu0 0
    %120 = vmatprep.subr.bf16.mxu0 0
    %121 = vmatpush1.bf16.xpose.msra.mxu0 0
    %122 = vmatprep.subr.bf16.mxu0 0
    %123 = vmatpush1.bf16.xpose.msra.mxu0 0
    %124 = vmatprep.subr.bf16.mxu0 0
    %125 = vmatpush1.bf16.xpose.msra.mxu0 0
    %126 = vmatprep.subr.bf16.mxu0 0
    %127 = vmatpush1.bf16.xpose.msra.mxu0 0
    %128 = vmatprep.subr.bf16.mxu0 0
    %129 = vmatpush1.bf16.xpose.msra.mxu0 0
    %130 = vmatprep.subr.bf16.mxu0 0
    %131 = vmatpush1.bf16.xpose.msra.mxu0 0
    %132 = vmatprep.subr.bf16.mxu0 0
    %133 = vmatpush1.bf16.xpose.msra.mxu0 0
    %134 = vmatprep.subr.bf16.mxu0 0
    %135 = vmatpush1.bf16.xpose.msra.mxu0 0
    %136 = vmatprep.subr.bf16.mxu0 0
    %137 = vmatpush1.bf16.xpose.msra.mxu0 0
    %138 = vmatprep.mubr.bf16.mxu0 0
    %139 = vmatmul.mubr.bf16.gmra.mrb[0].mxu0 %v95
    %v140 = vpop.f32.mrb[0].mxu0
    %v141 = vadd.f32 %v81, %v140
    %v142 = vpop.f32.mrb[0].mxu0
    %v143 = vpop.f32.mrb[0].mxu0
    %v144 = vadd.f32 %v81, %v143
    %v145 = vpop.f32.mrb[0].mxu0
    %146 = vmatprep.mubr.bf16.mxu0 0
    %147 = vmatmul.mubr.bf16.gmra.mrb[0].mxu0 %v98
    %v148 = vpop.f32.mrb[0].mxu0
    %v149 = vadd.f32 %v81, %v148
    %v150 = vpop.f32.mrb[0].mxu0
    %v151 = vpop.f32.mrb[0].mxu0
    %v152 = vadd.f32 %v81, %v151
    %v153 = vpop.f32.mrb[0].mxu0
    %154 = vdwg.mxu0
    %v155 = vpack.c.bf16 %v144, %v141
    %v156 = vpack.c.bf16 %v152, %v149
    %v159 = vunpack.c.l.b16 %v155
    %v160 = vunpack.c.h.b16 %v155
    %v161 = vunpack.c.l.b16 %v156
    %v162 = vunpack.c.h.b16 %v156
    %v163 = vpack.c.b16 %v159, %v159
    %v164 = vpack.c.b16 %v160, %v160
    %v165 = vpack.c.b16 %v161, %v161
    %v166 = vpack.c.b16 %v162, %v162
    %vm171 = vcmask 257024
    %172 = vst.msk [vmem:[#allocation8] sm:$0xf] %vm171, %v163
    %173 = vst.msk [vmem:[#allocation8 + $0x4] sm:$0xf] %vm171, %v164
    %174 = vst.msk [vmem:[#allocation8 + $0x8] sm:$0xf] %vm171, %v165
    %175 = vst.msk [vmem:[#allocation8 + $0xc] sm:$0xf] %vm171, %v166
    %v176 = vld [vmem:[#allocation7] sm:$0xf]
    %v177 = vld [vmem:[#allocation7 + $0x4] sm:$0xf]
    %v178 = vld [vmem:[#allocation7 + $0x8] sm:$0xf]
    %v179 = vld [vmem:[#allocation7 + $0xc] sm:$0xf]
    %v180 = vld [vmem:[%s4] sm:$0x1]
    %v182 = vlaneseq
    %v183 = vshrl.u32 %v182, 7
    %v184 = vsub.s32 0, %v183
    %v185 = vrot.slane %v180, %v184
    %v191 = vunpack.c.l.b16 %v176
    %v192 = vunpack.c.l.b16 %v177
    %v193 = vunpack.c.l.b16 %v178
    %v194 = vunpack.c.l.b16 %v179
    %v195 = vpack.c.b16 %v192, %v191
    %v196 = vpack.c.b16 %v194, %v193
    %v198 = vsel %vm93, %v195, 0
    %v201 = vsel %vm93, %v196, 0
    %203 = vmatprep.subr.bf16.mxu0 0
    %204 = vmatpush1.bf16.xpose.msra.mxu0 %v198
    %205 = vmatprep.subr.bf16.mxu0 0
    %206 = vmatpush1.bf16.xpose.msra.mxu0 %v201
    %207 = vmatprep.subr.bf16.mxu0 0
    %208 = vmatpush1.bf16.xpose.msra.mxu0 0
    %209 = vmatprep.subr.bf16.mxu0 0
    %210 = vmatpush1.bf16.xpose.msra.mxu0 0
    %211 = vmatprep.subr.bf16.mxu0 0
    %212 = vmatpush1.bf16.xpose.msra.mxu0 0
    %213 = vmatprep.subr.bf16.mxu0 0
    %214 = vmatpush1.bf16.xpose.msra.mxu0 0
    %215 = vmatprep.subr.bf16.mxu0 0
    %216 = vmatpush1.bf16.xpose.msra.mxu0 0
    %217 = vmatprep.subr.bf16.mxu0 0
    %218 = vmatpush1.bf16.xpose.msra.mxu0 0
    %219 = vmatprep.subr.bf16.mxu0 0
    %220 = vmatpush1.bf16.xpose.msra.mxu0 0
    %221 = vmatprep.subr.bf16.mxu0 0
    %222 = vmatpush1.bf16.xpose.msra.mxu0 0
    %223 = vmatprep.subr.bf16.mxu0 0
    %224 = vmatpush1.bf16.xpose.msra.mxu0 0
    %225 = vmatprep.subr.bf16.mxu0 0
    %226 = vmatpush1.bf16.xpose.msra.mxu0 0
    %227 = vmatprep.subr.bf16.mxu0 0
    %228 = vmatpush1.bf16.xpose.msra.mxu0 0
    %229 = vmatprep.subr.bf16.mxu0 0
    %230 = vmatpush1.bf16.xpose.msra.mxu0 0
    %231 = vmatprep.subr.bf16.mxu0 0
    %232 = vmatpush1.bf16.xpose.msra.mxu0 0
    %233 = vmatprep.subr.bf16.mxu0 0
    %234 = vmatpush1.bf16.xpose.msra.mxu0 0
    %235 = vmatprep.mubr.bf16.mxu0 0
    %236 = vmatmul.mubr.bf16.gmra.mrb[0].mxu0 %v95
    %v237 = vpop.f32.mrb[0].mxu0
    %v238 = vadd.f32 %v185, %v237
    %v239 = vpop.f32.mrb[0].mxu0
    %v240 = vpop.f32.mrb[0].mxu0
    %v241 = vadd.f32 %v185, %v240
    %v242 = vpop.f32.mrb[0].mxu0
    %243 = vmatprep.mubr.bf16.mxu0 0
    %244 = vmatmul.mubr.bf16.gmra.mrb[0].mxu0 %v98
    %v245 = vpop.f32.mrb[0].mxu0
    %v246 = vadd.f32 %v185, %v245
    %v247 = vpop.f32.mrb[0].mxu0
    %v248 = vpop.f32.mrb[0].mxu0
    %v249 = vadd.f32 %v185, %v248
    %v250 = vpop.f32.mrb[0].mxu0
    %251 = vdwg.mxu0
    %v252 = vpack.c.bf16 %v241, %v238
    %v253 = vpack.c.bf16 %v249, %v246
    %v256 = vunpack.c.l.b16 %v252
    %v257 = vunpack.c.h.b16 %v252
    %v258 = vunpack.c.l.b16 %v253
    %v259 = vunpack.c.h.b16 %v253
    %v260 = vpack.c.b16 %v256, %v256
    %v261 = vpack.c.b16 %v257, %v257
    %v262 = vpack.c.b16 %v258, %v258
    %v263 = vpack.c.b16 %v259, %v259
    %268 = vst.msk [vmem:[#allocation9] sm:$0xf] %vm171, %v260
    %269 = vst.msk [vmem:[#allocation9 + $0x4] sm:$0xf] %vm171, %v261
    %270 = vst.msk [vmem:[#allocation9 + $0x8] sm:$0xf] %vm171, %v262
    %271 = vst.msk [vmem:[#allocation9 + $0xc] sm:$0xf] %vm171, %v263
    // Predicated region
    $region34: #{tpu_custom_call.1} parent=1 // pred_check
      _
    $region35: #{tpu_custom_call.1} parent=1 // pred_check_branch
      %273 = sbr.rel (0) target = $region37
    $region36: #{tpu_custom_call.1} parent=1 // pred_region
      %s275 = ssub.s32 256, 256
      %276 = vsyncadd [#allocation4], %s275
      %s277 = sshll.u32 [#allocation8], 4
      %s278 = int_to_ptr.vmem [resolvable:$true] %s277
      %283 = dma.vmem_to_hbm [thread:$0]  %s278, 256, %s5, [#allocation4], 64, 64, 4
    $region37: #{tpu_custom_call.1} parent=1 // pred_fallthru
      _
    // Predicated region
    $region38: #{tpu_custom_call.1} parent=1 // pred_check
      _
    $region39: #{tpu_custom_call.1} parent=1 // pred_check_branch
      %285 = sbr.rel (0) target = $region41
    $region40: #{tpu_custom_call.1} parent=1 // pred_region
      %s287 = ssub.s32 256, 256
      %288 = vsyncadd [#allocation10], %s287
      %s289 = sshll.u32 [#allocation9], 4
      %s290 = int_to_ptr.vmem [resolvable:$true] %s289
      %295 = dma.vmem_to_hbm [thread:$0]  %s290, 256, %s6, [#allocation10], 64, 64, 4
    $region41: #{tpu_custom_call.1} parent=1 // pred_fallthru
      _
    // Predicated region
    $region42: #{tpu_custom_call.1} parent=1 // pred_check
      _
    $region43: #{tpu_custom_call.1} parent=1 // pred_check_branch
      %297 = sbr.rel (0) target = $region45
    $region44: #{tpu_custom_call.1} parent=1 // pred_region
      %298 = dma.done [#allocation4], 256
    $region45: #{tpu_custom_call.1} parent=1 // pred_fallthru
      _
    // Predicated region
    $region46: #{tpu_custom_call.1} parent=1 // pred_check
      _
    $region47: #{tpu_custom_call.1} parent=1 // pred_check_branch
      %300 = sbr.rel (0) target = $region49
    $region48: #{tpu_custom_call.1} parent=1 // pred_region
      %301 = dma.done [#allocation10], 256
    $region49: #{tpu_custom_call.1} parent=1 // pred_fallthru
      _
    %302 = vsyncpa [#allocation3], 1
    %303 = vsyncpa [#allocation6], 1
    %304 = vsyncpa [#allocation4], 1
    %305 = vsyncpa [#allocation10], 1

</llo_original>
